<compile_context>
chip_gen: v7x
topology: tpu7x:2x2x1
jax: 0.10.0
libtpu: 0.0.40
codegen_flags: <defaults>
</compile_context>

<pallas_src>
import jax
import jax.numpy as jnp
from jax import lax
from jax.experimental import pallas as pl
from jax.experimental.pallas import tpu as pltpu

LN_EPS = 1e-12          # BERT default layer_norm_eps
_INV_SQRT2 = 0.7071067811865475


def _round_up(x, m):
    return ((x + m - 1) // m) * m


def _cdiv(a, b):
    return -(-a // b)


def _default_tiles(weight_itemsize):
    """Generation-tuned (TM, TL) targets (ridge points per perf review)."""
    kind = ""
    try:
        kind = jax.devices()[0].device_kind.lower()
    except Exception:
        pass
    if "v7" in kind:
        # 64 MiB VMEM / ~310 flops/byte ridge; keep footprint modest.
        return 512, (2048 if weight_itemsize <= 2 else 1024)
    if "v5" in kind:
        # lowest HBM BW; ridge ~240 flops/byte.
        # TODO(synk): consider pipeline_mode=pl.Buffered(3) on the decoder-W spec on v5e.
        return 512, 2048
    # v6e / default: ridge ~640 flops/byte, 128 MiB VMEM.
    return 1024, 2048


def bert_lm_head_kernel(x_ref, w_t_ref, b_t_ref, gamma_ref, beta_ref,
                        w_d_ref, b_d_ref, out_ref, h_ref):
    """out = LayerNorm(gelu(x @ Wt + bt)) @ Wd + bd, tiled over (rows, vocab)."""

    # ---- transform: compute once per row tile (first vocab tile only) ----
    @pl.when(pl.program_id(1) == 0)
    def _compute_transform():
        h = jnp.dot(x_ref[...], w_t_ref[...],
                    preferred_element_type=jnp.float32)          # (TM, H) f32 acc
        h = h + b_t_ref[...].astype(jnp.float32)
        # exact (erf) gelu, f32 — matches torch.nn.GELU default
        h = 0.5 * h * (1.0 + lax.erf(h * _INV_SQRT2))
        # LayerNorm over the (full, untiled) hidden dim
        mean = jnp.mean(h, axis=-1, keepdims=True)
        var = jnp.mean(jnp.square(h - mean), axis=-1, keepdims=True)
        h = (h - mean) * lax.rsqrt(var + LN_EPS)
        h = h * gamma_ref[...].astype(jnp.float32) + beta_ref[...].astype(jnp.float32)
        # Cache ONCE in the decoder matmul's input dtype (no per-vocab-tile recast).
        h_ref[...] = h.astype(h_ref.dtype)

    # ---- decoder: tiled matmul over vocab, reusing the cached transform ----
    logits = jnp.dot(h_ref[...], w_d_ref[...], preferred_element_type=jnp.float32)
    logits = logits + b_d_ref[...].astype(jnp.float32)
    out_ref[...] = logits.astype(out_ref.dtype)


def bert_lm_prediction_head(hidden_states, params, *, tm=None, tl=None,
                            out_dtype=None, weights_dtype=None):
    """hidden_states: (B, S, H). Weights are pre-transposed to (in, out).

    weights_dtype: optionally cast transform/decoder weights (e.g. jnp.bfloat16) for the
    MXU-native path; accumulation stays f32.
    out_dtype: optionally emit bf16 logits to halve output writeback.
    """
    B, S, H = hidden_states.shape
    w_t, b_t = params["transform_w"], params["transform_b"]
    gamma, beta = params["ln_gamma"], params["ln_beta"]
    w_d, b_d = params["decoder_w"], params["decoder_b"]
    if weights_dtype is not None:
        w_t = w_t.astype(weights_dtype)
        w_d = w_d.astype(weights_dtype)
    # TODO(synk): on v7x, fp8 decoder weights with a per-column scale in the epilogue would
    # halve weight traffic again; left as a follow-up.

    L = w_d.shape[1]
    M = B * S
    x2d = hidden_states.reshape(M, H)
    out_dtype = out_dtype or hidden_states.dtype

    w_item = jnp.dtype(w_d.dtype).itemsize
    if tm is None or tl is None:
        dtm, dtl = _default_tiles(w_item)
        tm = tm or dtm
        tl = tl or dtl

    # ---- row tiling: minimal padding; single tile uses the exact extent ----
    n_m = max(1, _cdiv(M, tm))
    if n_m == 1:
        TM, M_pad = M, M                    # block == full extent: no pad, no slice
    else:
        TM = _round_up(_cdiv(M, n_m), 8)    # 8-multiple row tile
        M_pad = n_m * TM

    # ---- vocab tiling: lane-dense 128-multiple tiles, minimal padding ----
    n_l = max(1, _cdiv(L, tl))
    if n_l == 1:
        TL, L_pad = L, L                    # decoder weight fully resident, no pad
    else:
        TL = _round_up(_cdiv(L, n_l), 128)
        L_pad = n_l * TL

    if M_pad != M:
        x2d = jnp.pad(x2d, ((0, M_pad - M), (0, 0)))
    if L_pad != L:
        # TODO(synk): pre-pad decoder weights once at parameter-load time to avoid this
        # per-call HBM copy of the full decoder matrix.
        w_d = jnp.pad(w_d, ((0, 0), (0, L_pad - L)))
        b_d = jnp.pad(b_d, ((0, 0), (0, L_pad - L)))

    grid = (M_pad // TM, L_pad // TL)

    x_item = jnp.dtype(x2d.dtype).itemsize
    wt_item = jnp.dtype(w_t.dtype).itemsize
    out_item = jnp.dtype(out_dtype).itemsize

    # VMEM footprint: double-buffered streamed tiles + resident transform params + h cache.
    vmem_bytes = (2 * (TM * H * x_item            # x row tile
                       + H * TL * w_item          # decoder W tile
                       + TL * w_item              # decoder bias tile
                       + TM * TL * out_item)      # output tile
                  + 2 * (H * H + 3 * H) * wt_item # Wt, bt, gamma, beta (constant blocks)
                  + TM * H * w_item)              # cached transform scratch
    vmem_limit_bytes = int(min(max(int(vmem_bytes * 1.3) + (2 << 20), 32 << 20), 100 << 20))

    cost = pl.CostEstimate(
        flops=2 * M_pad * H * H + 2 * M_pad * H * L_pad,
        transcendentals=M_pad * H,                               # erf in gelu
        bytes_accessed=(x2d.size * x_item
                        + w_t.size * wt_item
                        + grid[0] * (w_d.size + b_d.size) * w_item   # W_d streamed per row tile
                        + M_pad * L_pad * out_item),
    )

    out = pl.pallas_call(
        bert_lm_head_kernel,
        out_shape=jax.ShapeDtypeStruct((M_pad, L_pad), out_dtype),
        grid_spec=pltpu.PrefetchScalarGridSpec(
            num_scalar_prefetch=0,
            grid=grid,                                           # (row tiles, vocab tiles)
            in_specs=[
                pl.BlockSpec((TM, H), lambda i, j: (i, 0)),      # x rows
                pl.BlockSpec((H, H), lambda i, j: (0, 0)),       # transform W (in,out)
                pl.BlockSpec((1, H), lambda i, j: (0, 0)),       # transform b
                pl.BlockSpec((1, H), lambda i, j: (0, 0)),       # LN gamma
                pl.BlockSpec((1, H), lambda i, j: (0, 0)),       # LN beta
                pl.BlockSpec((H, TL), lambda i, j: (0, j)),      # decoder W tile (in,out)
                pl.BlockSpec((1, TL), lambda i, j: (0, j)),      # decoder bias tile
            ],
            out_specs=pl.BlockSpec((TM, TL), lambda i, j: (i, j)),
            # Transform cache in the matmul-input (weight) dtype — no per-step cast.
            scratch_shapes=[pltpu.VMEM((TM, H), w_d.dtype)],
        ),
        compiler_params=pltpu.CompilerParams(
            dimension_semantics=("parallel", "arbitrary"),       # megacore on rows
            vmem_limit_bytes=vmem_limit_bytes,
        ),
        cost_estimate=cost,
    )(x2d, w_t, b_t, gamma, beta, w_d, b_d)

    if M_pad != M or L_pad != L:
        out = out[:M, :L]
    return out.reshape(B, S, L)


def _reference(hidden_states, params):
    """Pure-JAX reference of the PyTorch forward.

    Note: decoder is declared bias=False in the module, but `self.bias` is tied to
    `decoder.bias`, so a bias IS added — matched here."""
    x = hidden_states.astype(jnp.float32)
    h = x @ params["transform_w"] + params["transform_b"][0]
    h = 0.5 * h * (1.0 + lax.erf(h * _INV_SQRT2))
    mean = jnp.mean(h, axis=-1, keepdims=True)
    var = jnp.mean(jnp.square(h - mean), axis=-1, keepdims=True)
    h = (h - mean) / jnp.sqrt(var + LN_EPS)
    h = h * params["ln_gamma"][0] + params["ln_beta"][0]
    return h @ params["decoder_w"] + params["decoder_b"][0]


def _make_params(key, H, L):
    k_wt, k_bt, k_g, k_be, k_wd, k_bd = jax.random.split(key, 6)
    return {
        # nn.Linear(hidden, hidden) weight, pre-transposed to (in, out)
        "transform_w": 0.02 * jax.random.normal(k_wt, (H, H), dtype=jnp.float32),
        "transform_b": 0.01 * jax.random.normal(k_bt, (1, H), dtype=jnp.float32),
        # LayerNorm params (non-trivial to exercise the affine path)
        "ln_gamma": 1.0 + 0.05 * jax.random.normal(k_g, (1, H), dtype=jnp.float32),
        "ln_beta": 0.01 * jax.random.normal(k_be, (1, H), dtype=jnp.float32),
        # decoder: nn.Linear(hidden, num_labels, bias=False), pre-transposed
        "decoder_w": 0.02 * jax.random.normal(k_wd, (H, L), dtype=jnp.float32),
        # self.bias (tied to decoder.bias)
        "decoder_b": 0.01 * jax.random.normal(k_bd, (1, L), dtype=jnp.float32),
    }


if __name__ == "__main__":
    key = jax.random.PRNGKey(0)

    # ---- Test 1: small config (batch=2, seq=8, hidden=32, num_labels=64), default tiles ----
    B, S, H, L = 2, 8, 32, 64
    k_x, k_p, k_x2, k_p2 = jax.random.split(key, 4)
    hidden_states = jax.random.normal(k_x, (B, S, H), dtype=jnp.float32)
    params = _make_params(k_p, H, L)

    out = bert_lm_prediction_head(hidden_states, params)
    out = jax.block_until_ready(out)
    ref = _reference(hidden_states, params)
    assert out.shape == (B, S, L)
    assert jnp.allclose(out, ref, atol=1e-5, rtol=1e-5), "mismatch vs reference (test 1)"

    # ---- Test 2: shapes that exercise the multi-tile grid + vocab padding path ----
    B2, S2, H2, L2 = 2, 72, 128, 320
    hs2 = jax.random.normal(k_x2, (B2, S2, H2), dtype=jnp.float32)
    params2 = _make_params(k_p2, H2, L2)
    out2 = bert_lm_prediction_head(hs2, params2, tm=64, tl=128)
    out2 = jax.block_until_ready(out2)
    ref2 = _reference(hs2, params2)
    assert out2.shape == (B2, S2, L2)
    assert jnp.allclose(out2, ref2, atol=1e-4, rtol=1e-4), "mismatch vs reference (test 2)"

    print("KERNEL_OK")
</pallas_src>

<mosaic_0001>
module attributes {stable_mosaic.version = 11 : i64} {
  func.func @bert_lm_head_kernel(%arg0: i32, %arg1: i32, %arg2: memref<16x32xf32, #tpu.memory_space<vmem>>, %arg3: memref<32x32xf32, #tpu.memory_space<vmem>>, %arg4: memref<1x32xf32, #tpu.memory_space<vmem>>, %arg5: memref<1x32xf32, #tpu.memory_space<vmem>>, %arg6: memref<1x32xf32, #tpu.memory_space<vmem>>, %arg7: memref<32x64xf32, #tpu.memory_space<vmem>>, %arg8: memref<1x64xf32, #tpu.memory_space<vmem>>, %arg9: memref<16x64xf32, #tpu.memory_space<vmem>>, %arg10: memref<16x32xf32, #tpu.memory_space<vmem>>) attributes {dimension_semantics = [#tpu.dimension_semantics<parallel>, #tpu.dimension_semantics<arbitrary>], iteration_bounds = array<i64: 1, 1>, scalar_prefetch = 0 : i64, scratch_operands = 1 : i64, tpu.core_type = #tpu.core_type<tc>, window_params = [{transform_indices = @transform_0, window_bounds = array<i64: 16, 32>}, {pipeline_mode = #tpu.pipeline_mode<synchronous>, transform_indices = @transform_1, window_bounds = array<i64: 32, 32>}, {pipeline_mode = #tpu.pipeline_mode<synchronous>, transform_indices = @transform_2, window_bounds = array<i64: 1, 32>}, {pipeline_mode = #tpu.pipeline_mode<synchronous>, transform_indices = @transform_3, window_bounds = array<i64: 1, 32>}, {pipeline_mode = #tpu.pipeline_mode<synchronous>, transform_indices = @transform_4, window_bounds = array<i64: 1, 32>}, {transform_indices = @transform_5, window_bounds = array<i64: 32, 64>}, {transform_indices = @transform_6, window_bounds = array<i64: 1, 64>}, {transform_indices = @transform_7, window_bounds = array<i64: 16, 64>}]} {
    %c0_i32 = arith.constant 0 : i32
    %0 = arith.cmpi eq, %arg1, %c0_i32 : i32
    %1 = arith.extui %0 : i1 to i32
    %c0_i32_0 = arith.constant 0 : i32
    %2 = arith.cmpi ne, %1, %c0_i32_0 : i32
    scf.if %2 {
      %c0_8 = arith.constant 0 : index
      %c0_9 = arith.constant 0 : index
      %10 = vector.load %arg2[%c0_8, %c0_9] : memref<16x32xf32, #tpu.memory_space<vmem>>, vector<16x32xf32>
      %c0_10 = arith.constant 0 : index
      %c0_11 = arith.constant 0 : index
      %11 = vector.load %arg3[%c0_10, %c0_11] : memref<32x32xf32, #tpu.memory_space<vmem>>, vector<32x32xf32>
      %cst_12 = arith.constant dense<0.000000e+00> : vector<16x32xf32>
      %12 = tpu.matmul %10, %11, %cst_12 {dimension_numbers = #tpu.dot_dimension_numbers<[1], [0], [0], [1], [0, 0, 1, 1], [], []>} : vector<16x32xf32>, vector<32x32xf32>, vector<16x32xf32> -> vector<16x32xf32>
      %c0_13 = arith.constant 0 : index
      %c0_14 = arith.constant 0 : index
      %13 = vector.load %arg4[%c0_13, %c0_14] : memref<1x32xf32, #tpu.memory_space<vmem>>, vector<1x32xf32>
      %14 = vector.broadcast %13 : vector<1x32xf32> to vector<16x32xf32>
      %15 = arith.addf %12, %14 : vector<16x32xf32>
      %cst_15 = arith.constant 5.000000e-01 : f32
      %16 = vector.broadcast %cst_15 : f32 to vector<16x32xf32>
      %17 = arith.mulf %16, %15 : vector<16x32xf32>
      %cst_16 = arith.constant 0.707106769 : f32
      %18 = vector.broadcast %cst_16 : f32 to vector<16x32xf32>
      %19 = arith.mulf %15, %18 : vector<16x32xf32>
      %20 = math.erf %19 : vector<16x32xf32>
      %cst_17 = arith.constant 1.000000e+00 : f32
      %21 = vector.broadcast %cst_17 : f32 to vector<16x32xf32>
      %22 = arith.addf %21, %20 : vector<16x32xf32>
      %23 = arith.mulf %17, %22 : vector<16x32xf32>
      %cst_18 = arith.constant dense<0.000000e+00> : vector<16xf32>
      %24 = vector.multi_reduction <add>, %23, %cst_18 [1] : vector<16x32xf32> to vector<16xf32>
      %25 = vector.shape_cast %24 : vector<16xf32> to vector<16x1xf32>
      %cst_19 = arith.constant 3.200000e+01 : f32
      %26 = vector.broadcast %cst_19 : f32 to vector<16x1xf32>
      %27 = arith.divf %25, %26 : vector<16x1xf32>
      %28 = vector.broadcast %27 : vector<16x1xf32> to vector<16x32xf32>
      %29 = arith.subf %23, %28 : vector<16x32xf32>
      %30 = arith.mulf %29, %29 : vector<16x32xf32>
      %cst_20 = arith.constant dense<0.000000e+00> : vector<16xf32>
      %31 = vector.multi_reduction <add>, %30, %cst_20 [1] : vector<16x32xf32> to vector<16xf32>
      %32 = vector.shape_cast %31 : vector<16xf32> to vector<16x1xf32>
      %cst_21 = arith.constant 3.200000e+01 : f32
      %33 = vector.broadcast %cst_21 : f32 to vector<16x1xf32>
      %34 = arith.divf %32, %33 : vector<16x1xf32>
      %35 = vector.broadcast %27 : vector<16x1xf32> to vector<16x32xf32>
      %36 = arith.subf %23, %35 : vector<16x32xf32>
      %cst_22 = arith.constant 9.99999996E-13 : f32
      %37 = vector.broadcast %cst_22 : f32 to vector<16x1xf32>
      %38 = arith.addf %34, %37 : vector<16x1xf32>
      %39 = math.rsqrt %38 : vector<16x1xf32>
      %40 = vector.broadcast %39 : vector<16x1xf32> to vector<16x32xf32>
      %41 = arith.mulf %36, %40 : vector<16x32xf32>
      %c0_23 = arith.constant 0 : index
      %c0_24 = arith.constant 0 : index
      %42 = vector.load %arg5[%c0_23, %c0_24] : memref<1x32xf32, #tpu.memory_space<vmem>>, vector<1x32xf32>
      %43 = vector.broadcast %42 : vector<1x32xf32> to vector<16x32xf32>
      %44 = arith.mulf %41, %43 : vector<16x32xf32>
      %c0_25 = arith.constant 0 : index
      %c0_26 = arith.constant 0 : index
      %45 = vector.load %arg6[%c0_25, %c0_26] : memref<1x32xf32, #tpu.memory_space<vmem>>, vector<1x32xf32>
      %46 = vector.broadcast %45 : vector<1x32xf32> to vector<16x32xf32>
      %47 = arith.addf %44, %46 : vector<16x32xf32>
      %c0_27 = arith.constant 0 : index
      %c0_28 = arith.constant 0 : index
      %48 = vector.load %arg10[%c0_27, %c0_28] : memref<16x32xf32, #tpu.memory_space<vmem>>, vector<16x32xf32>
      tpu.vector_store %arg10[%c0_27, %c0_28], %47 {strides = array<i32>} : memref<16x32xf32, #tpu.memory_space<vmem>>, vector<16x32xf32>,
    } else {
    }
    %c0 = arith.constant 0 : index
    %c0_1 = arith.constant 0 : index
    %3 = vector.load %arg10[%c0, %c0_1] : memref<16x32xf32, #tpu.memory_space<vmem>>, vector<16x32xf32>
    %c0_2 = arith.constant 0 : index
    %c0_3 = arith.constant 0 : index
    %4 = vector.load %arg7[%c0_2, %c0_3] : memref<32x64xf32, #tpu.memory_space<vmem>>, vector<32x64xf32>
    %cst = arith.constant dense<0.000000e+00> : vector<16x64xf32>
    %5 = tpu.matmul %3, %4, %cst {dimension_numbers = #tpu.dot_dimension_numbers<[1], [0], [0], [1], [0, 0, 1, 1], [], []>} : vector<16x32xf32>, vector<32x64xf32>, vector<16x64xf32> -> vector<16x64xf32>
    %c0_4 = arith.constant 0 : index
    %c0_5 = arith.constant 0 : index
    %6 = vector.load %arg8[%c0_4, %c0_5] : memref<1x64xf32, #tpu.memory_space<vmem>>, vector<1x64xf32>
    %7 = vector.broadcast %6 : vector<1x64xf32> to vector<16x64xf32>
    %8 = arith.addf %5, %7 : vector<16x64xf32>
    %c0_6 = arith.constant 0 : index
    %c0_7 = arith.constant 0 : index
    %9 = vector.load %arg9[%c0_6, %c0_7] : memref<16x64xf32, #tpu.memory_space<vmem>>, vector<16x64xf32>
    tpu.vector_store %arg9[%c0_6, %c0_7], %8 {strides = array<i32>} : memref<16x64xf32, #tpu.memory_space<vmem>>, vector<16x64xf32>,
    return
  }
  func.func @transform_0(%arg0: i32, %arg1: i32) -> (i32, i32) {
    %c0_i32 = arith.constant 0 : i32
    %c0_i32_0 = arith.constant 0 : i32
    return %arg0, %c0_i32 : i32, i32
  }
  func.func @transform_1(%arg0: i32, %arg1: i32) -> (i32, i32) {
    %c0_i32 = arith.constant 0 : i32
    %c0_i32_0 = arith.constant 0 : i32
    %c0_i32_1 = arith.constant 0 : i32
    return %c0_i32, %c0_i32_0 : i32, i32
  }
  func.func @transform_2(%arg0: i32, %arg1: i32) -> (i32, i32) {
    %c0_i32 = arith.constant 0 : i32
    %c0_i32_0 = arith.constant 0 : i32
    %c0_i32_1 = arith.constant 0 : i32
    return %c0_i32, %c0_i32_0 : i32, i32
  }
  func.func @transform_3(%arg0: i32, %arg1: i32) -> (i32, i32) {
    %c0_i32 = arith.constant 0 : i32
    %c0_i32_0 = arith.constant 0 : i32
    %c0_i32_1 = arith.constant 0 : i32
    return %c0_i32, %c0_i32_0 : i32, i32
  }
  func.func @transform_4(%arg0: i32, %arg1: i32) -> (i32, i32) {
    %c0_i32 = arith.constant 0 : i32
    %c0_i32_0 = arith.constant 0 : i32
    %c0_i32_1 = arith.constant 0 : i32
    return %c0_i32, %c0_i32_0 : i32, i32
  }
  func.func @transform_5(%arg0: i32, %arg1: i32) -> (i32, i32) {
    %c0_i32 = arith.constant 0 : i32
    %c0_i32_0 = arith.constant 0 : i32
    return %c0_i32, %arg1 : i32, i32
  }
  func.func @transform_6(%arg0: i32, %arg1: i32) -> (i32, i32) {
    %c0_i32 = arith.constant 0 : i32
    %c0_i32_0 = arith.constant 0 : i32
    return %c0_i32, %arg1 : i32, i32
  }
  func.func @transform_7(%arg0: i32, %arg1: i32) -> (i32, i32) {
    %c0_i32 = arith.constant 0 : i32
    return %arg0, %arg1 : i32, i32
  }
}

</mosaic_0001>

<llo_original>
// kernel: tpu_custom_call.1
$region0: #{tpu_custom_call.1}
  #allocation0 [shape = 'u32[]', space=smem, size = 0x4, offset = 0x4, fixed_abs, tag = 'smem constant byte address 0x4 - core index']
  #allocation1 [shape = 'u32[144,128]{1,0:T(1,128)}', space=vmem, size = 0x12000, scoped, tag = 'internal scratch']
  #allocation2 [shape = 'f32[16,32]{1,0:T(8,128)}', space=vmem, size = 0x2000, scoped, tag = 'scratch operand']
  %s0 = inlined_call_operand.hbm [shape: f32[16,32], index: 0, kind: input, shape index: {}]
  %s1 = inlined_call_operand.hbm [shape: f32[32,32], index: 1, kind: input, shape index: {}]
  %s2 = inlined_call_operand.vmem [shape: f32[1,32], index: 2, kind: input, shape index: {}]
  %s3 = inlined_call_operand.vmem [shape: f32[1,32], index: 3, kind: input, shape index: {}]
  %s4 = inlined_call_operand.vmem [shape: f32[1,32], index: 4, kind: input, shape index: {}]
  %s5 = inlined_call_operand.hbm [shape: f32[32,64], index: 5, kind: input, shape index: {}]
  %s6 = inlined_call_operand.vmem [shape: f32[1,64], index: 6, kind: input, shape index: {}]
  %s7 = inlined_call_operand.hbm [shape: f32[16,64], index: 7, kind: output, shape index: {}]
  %s8 = sld [smem:[#allocation0]]
  $region54: #{tpu_custom_call.1} parent=0
    _
  %s10 = ssub.s32 1, %s8
  %s11 = scalar_select 0, %s10, %s8
  $region1: #{tpu_custom_call.1} parent=0
    #allocation3 [shape = 'u8[8192]{0}', space=vmem, size = 0x2000, scoped, tag = 'input window, operand 0, single buffered']
    #allocation4 [shape = 's32[1]{0}', space=sflag, size = 0x4, scoped, tag = 'scoped memory for tpu_custom_call.1']
    #allocation5 [shape = 's32[1]{0}', space=sflag, size = 0x4, scoped, tag = 'scoped memory for tpu_custom_call.1']
    #allocation6 [shape = 'u8[16384]{0}', space=vmem, size = 0x4000, scoped, tag = 'input window, operand 1, single buffered']
    #allocation7 [shape = 's32[1]{0}', space=sflag, size = 0x4, scoped, tag = 'scoped memory for tpu_custom_call.1']
    #allocation8 [shape = 'u8[16384]{0}', space=vmem, size = 0x4000, scoped, tag = 'input window, operand 5, single buffered']
    #allocation9 [shape = 'u8[8192]{0}', space=vmem, size = 0x2000, scoped, tag = 'output window, operand 0, single buffered']
    %12 = vsyncpa [#allocation4], 0
    %13 = vsyncpa [#allocation7], 0
    %14 = vsyncpa [#allocation5], 0
    // Predicated region
    $region2: #{tpu_custom_call.1} parent=1 // pred_check
      _
    $region3: #{tpu_custom_call.1} parent=1 // pred_check_branch
      %16 = sbr.rel (0) target = $region5
    $region4: #{tpu_custom_call.1} parent=1 // pred_region
      %s18 = ssub.s32 256, 256
      %19 = vsyncadd [#allocation4], %s18
      %s20 = sshll.u32 [#allocation3], 4
      %s21 = int_to_ptr.vmem [resolvable:$true] %s20
      %26 = dma.hbm_to_vmem [thread:$0]  %s0, 256, %s21, [#allocation4], 128, 128, 8
    $region5: #{tpu_custom_call.1} parent=1 // pred_fallthru
      _
    // Predicated region
    $region6: #{tpu_custom_call.1} parent=1 // pred_check
      _
    $region7: #{tpu_custom_call.1} parent=1 // pred_check_branch
      %28 = sbr.rel (0) target = $region9
    $region8: #{tpu_custom_call.1} parent=1 // pred_region
      %s30 = ssub.s32 512, 512
      %31 = vsyncadd [#allocation7], %s30
      %s32 = sshll.u32 [#allocation6], 4
      %s33 = int_to_ptr.vmem [resolvable:$true] %s32
      %38 = dma.hbm_to_vmem [thread:$0]  %s1, 512, %s33, [#allocation7], 128, 128, 8
    $region9: #{tpu_custom_call.1} parent=1 // pred_fallthru
      _
    // Predicated region
    $region10: #{tpu_custom_call.1} parent=1 // pred_check
      _
    $region11: #{tpu_custom_call.1} parent=1 // pred_check_branch
      %40 = sbr.rel (0) target = $region13
    $region12: #{tpu_custom_call.1} parent=1 // pred_region
      _
    $region13: #{tpu_custom_call.1} parent=1 // pred_fallthru
      _
    // Predicated region
    $region14: #{tpu_custom_call.1} parent=1 // pred_check
      _
    $region15: #{tpu_custom_call.1} parent=1 // pred_check_branch
      %42 = sbr.rel (0) target = $region17
    $region16: #{tpu_custom_call.1} parent=1 // pred_region
      _
    $region17: #{tpu_custom_call.1} parent=1 // pred_fallthru
      _
    // Predicated region
    $region18: #{tpu_custom_call.1} parent=1 // pred_check
      _
    $region19: #{tpu_custom_call.1} parent=1 // pred_check_branch
      %44 = sbr.rel (0) target = $region21
    $region20: #{tpu_custom_call.1} parent=1 // pred_region
      _
    $region21: #{tpu_custom_call.1} parent=1 // pred_fallthru
      _
    // Predicated region
    $region22: #{tpu_custom_call.1} parent=1 // pred_check
      _
    $region23: #{tpu_custom_call.1} parent=1 // pred_check_branch
      %46 = sbr.rel (0) target = $region25
    $region24: #{tpu_custom_call.1} parent=1 // pred_region
      %s48 = ssub.s32 512, 512
      %49 = vsyncadd [#allocation7], %s48
      %s50 = sshll.u32 [#allocation8], 4
      %s51 = int_to_ptr.vmem [resolvable:$true] %s50
      %56 = dma.hbm_to_vmem [thread:$0]  %s5, 512, %s51, [#allocation7], 128, 128, 8
    $region25: #{tpu_custom_call.1} parent=1 // pred_fallthru
      _
    // Predicated region
    $region26: #{tpu_custom_call.1} parent=1 // pred_check
      _
    $region27: #{tpu_custom_call.1} parent=1 // pred_check_branch
      %58 = sbr.rel (0) target = $region29
    $region28: #{tpu_custom_call.1} parent=1 // pred_region
      _
    $region29: #{tpu_custom_call.1} parent=1 // pred_fallthru
      _
    // Predicated region
    $region30: #{tpu_custom_call.1} parent=1 // pred_check
      _
    $region31: #{tpu_custom_call.1} parent=1 // pred_check_branch
      %60 = sbr.rel (0) target = $region33
    $region32: #{tpu_custom_call.1} parent=1 // pred_region
      %61 = dma.done [#allocation4], 256
    $region33: #{tpu_custom_call.1} parent=1 // pred_fallthru
      _
    // Predicated region
    $region34: #{tpu_custom_call.1} parent=1 // pred_check
      _
    $region35: #{tpu_custom_call.1} parent=1 // pred_check_branch
      %63 = sbr.rel (0) target = $region37
    $region36: #{tpu_custom_call.1} parent=1 // pred_region
      %64 = dma.done [#allocation7], 512
    $region37: #{tpu_custom_call.1} parent=1 // pred_fallthru
      _
    // Predicated region
    $region38: #{tpu_custom_call.1} parent=1 // pred_check
      _
    $region39: #{tpu_custom_call.1} parent=1 // pred_check_branch
      %66 = sbr.rel (0) target = $region41
    $region40: #{tpu_custom_call.1} parent=1 // pred_region
      %67 = dma.done [#allocation7], 512
    $region41: #{tpu_custom_call.1} parent=1 // pred_fallthru
      _
    %p68 = scmp.eq.s32.totalorder 0, 0
    // Predicated region
    $region42: #{tpu_custom_call.1} parent=1 // pred_check
      %p69 = pneg %p68
    $region43: #{tpu_custom_call.1} parent=1 // pred_check_branch
      %71 = sbr.rel (%p69) target = $region45
    $region44: #{tpu_custom_call.1} parent=1 // pred_region
      %v72 = vld [vmem:[#allocation3] sm:$0xff]
      %v73 = vld [vmem:[#allocation3 + $0x8] sm:$0xff]
      %v74 = vld [vmem:[#allocation6] sm:$0xff]
      %v75 = vld [vmem:[#allocation6 + $0x8] sm:$0xff]
      %v76 = vld [vmem:[#allocation6 + $0x10] sm:$0xff]
      %v77 = vld [vmem:[#allocation6 + $0x18] sm:$0xff]
      %v78 = vld [vmem:[%s2] sm:$0x1]
      %v80 = vlaneseq
      %v81 = vshrl.u32 %v80, 7
      %v82 = vsub.s32 0, %v81
      %v83 = vrot.slane %v78, %v82
      %vm85 = vcmask 261120
      %v87 = vsel %vm85, %v72, 0
      %v90 = vsel %vm85, %v73, 0
      %92 = vmatprep.subr.mxu0 0.0
      %93 = vmatpush1.msra.mxu0 %v74
      %94 = vmatprep.subr.mxu0 0.0
      %95 = vmatpush1.msra.mxu0 %v75
      %96 = vmatprep.subr.mxu0 0.0
      %97 = vmatpush1.msra.mxu0 %v76
      %98 = vmatprep.subr.mxu0 0.0
      %99 = vmatpush1.msra.mxu0 %v77
      %100 = vmatprep.subr.mxu0 0.0
      %101 = vmatpush1.msra.mxu0 0.0
      %102 = vmatprep.subr.mxu0 0.0
      %103 = vmatpush1.msra.mxu0 0.0
      %104 = vmatprep.subr.mxu0 0.0
      %105 = vmatpush1.msra.mxu0 0.0
      %106 = vmatprep.subr.mxu0 0.0
      %107 = vmatpush1.msra.mxu0 0.0
      %108 = vmatprep.subr.mxu0 0.0
      %109 = vmatpush1.msra.mxu0 0.0
      %110 = vmatprep.subr.mxu0 0.0
      %111 = vmatpush1.msra.mxu0 0.0
      %112 = vmatprep.subr.mxu0 0.0
      %113 = vmatpush1.msra.mxu0 0.0
      %114 = vmatprep.subr.mxu0 0.0
      %115 = vmatpush1.msra.mxu0 0.0
      %116 = vmatprep.subr.mxu0 0.0
      %117 = vmatpush1.msra.mxu0 0.0
      %118 = vmatprep.subr.mxu0 0.0
      %119 = vmatpush1.msra.mxu0 0.0
      %120 = vmatprep.subr.mxu0 0.0
      %121 = vmatpush1.msra.mxu0 0.0
      %122 = vmatprep.subr.mxu0 0.0
      %123 = vmatpush1.msra.mxu0 0.0
      %124 = vmatprep.subr.mxu0 0.0
      %125 = vmatpush1.msra.mxu0 0.0
      %126 = vmatprep.subr.mxu0 0.0
      %127 = vmatpush1.msra.mxu0 0.0
      %128 = vmatprep.subr.mxu0 0.0
      %129 = vmatpush1.msra.mxu0 0.0
      %130 = vmatprep.subr.mxu0 0.0
      %131 = vmatpush1.msra.mxu0 0.0
      %132 = vmatprep.subr.mxu0 0.0
      %133 = vmatpush1.msra.mxu0 0.0
      %134 = vmatprep.subr.mxu0 0.0
      %135 = vmatpush1.msra.mxu0 0.0
      %136 = vmatprep.subr.mxu0 0.0
      %137 = vmatpush1.msra.mxu0 0.0
      %138 = vmatprep.subr.mxu0 0.0
      %139 = vmatpush1.msra.mxu0 0.0
      %140 = vmatprep.subr.mxu0 0.0
      %141 = vmatpush1.msra.mxu0 0.0
      %142 = vmatprep.subr.mxu0 0.0
      %143 = vmatpush1.msra.mxu0 0.0
      %144 = vmatprep.subr.mxu0 0.0
      %145 = vmatpush1.msra.mxu0 0.0
      %146 = vmatprep.subr.mxu0 0.0
      %147 = vmatpush1.msra.mxu0 0.0
      %148 = vmatprep.subr.mxu0 0.0
      %149 = vmatpush1.msra.mxu0 0.0
      %150 = vmatprep.subr.mxu0 0.0
      %151 = vmatpush1.msra.mxu0 0.0
      %152 = vmatprep.subr.mxu0 0.0
      %153 = vmatpush1.msra.mxu0 0.0
      %154 = vmatprep.subr.mxu0 0.0
      %155 = vmatpush1.msra.mxu0 0.0
      %156 = vmatprep.mubr.f32.mxu0 0.0
      %157 = vmatmul.mubr.f32.gmra.mrb[0].mxu0 %v87
      %v158 = vpop.f32.mrb[0].mxu0
      %v159 = vadd.f32 %v83, %v158
      %v160 = vpop.f32.mrb[0].mxu0
      %161 = vmatprep.mubr.f32.mxu0 0.0
      %162 = vmatmul.mubr.f32.gmra.mrb[0].mxu0 %v90
      %v163 = vpop.f32.mrb[0].mxu0
      %v164 = vadd.f32 %v83, %v163
      %v165 = vpop.f32.mrb[0].mxu0
      %166 = vdwg.mxu0
      %v167 = vmul.f32 %v159, 0.5
      %v168 = vmul.f32 %v164, 0.5
      %v169 = vmul.f32 %v159, 0.70710677
      %v170 = vmul.f32 %v164, 0.70710677
      %v171 = verf.f32.pop %v169
      %v172 = verf.f32.pop %v170
      %v173 = vadd.f32 %v171, 1.0
      %v174 = vadd.f32 %v172, 1.0
      %v175 = vmul.f32 %v167, %v173
      %v176 = vmul.f32 %v168, %v174
      %v177 = vsel %vm85, %v175, 0.0
      %178 = vadd.xlane.f32.xlu0 %v177
      %v179 = vpop.xlane.xlu0 %178
      %v180 = vsel %vm85, %v176, 0.0
      %181 = vadd.xlane.f32.xlu0 %v180
      %v182 = vpop.xlane.xlu0 %181
      %v183 = vrcp.pop 32.0
      %v184 = vmul.f32 %v179, %v183
      %v185 = vmul.f32 %v182, %v183
      %v186 = vsub.f32 %v175, %v184
      %v187 = vsub.f32 %v176, %v185
      %v188 = vmul.f32 %v186, %v186
      %v189 = vmul.f32 %v187, %v187
      %v190 = vsel %vm85, %v188, 0.0
      %191 = vadd.xlane.f32.xlu0 %v190
      %v192 = vpop.xlane.xlu0 %191
      %v193 = vsel %vm85, %v189, 0.0
      %194 = vadd.xlane.f32.xlu0 %v193
      %v195 = vpop.xlane.xlu0 %194
      %v196 = vmul.f32 %v192, %v183
      %v197 = vmul.f32 %v195, %v183
      %v198 = vadd.f32 %v196, 1e-12
      %v199 = vadd.f32 %v197, 1e-12
      %v200 = vrsqrt.pop %v198
      %v201 = vrsqrt.pop %v199
      %v202 = vmul.f32 %v186, %v200
      %v203 = vmul.f32 %v187, %v201
      %v204 = vld [vmem:[%s3] sm:$0x1]
      %v206 = vlaneseq
      %v207 = vshrl.u32 %v206, 7
      %v208 = vsub.s32 0, %v207
      %v209 = vrot.slane %v204, %v208
      %v211 = vmul.f32 %v202, %v209
      %v212 = vmul.f32 %v203, %v209
      %v213 = vld [vmem:[%s4] sm:$0x1]
      %v215 = vlaneseq
      %v216 = vshrl.u32 %v215, 7
      %v217 = vsub.s32 0, %v216
      %v218 = vrot.slane %v213, %v217
      %v220 = vadd.f32 %v211, %v218
      %v221 = vadd.f32 %v212, %v218
      %222 = vst.msk [vmem:[#allocation2] sm:$0xff] %vm85, %v220
      %223 = vst.msk [vmem:[#allocation2 + $0x8] sm:$0xff] %vm85, %v221
    $region45: #{tpu_custom_call.1} parent=1 // pred_fallthru
      _
    %v224 = vld [vmem:[#allocation2] sm:$0xff]
    %v225 = vld [vmem:[#allocation2 + $0x8] sm:$0xff]
    %v226 = vld [vmem:[#allocation8] sm:$0xff]
    %v227 = vld [vmem:[#allocation8 + $0x8] sm:$0xff]
    %v228 = vld [vmem:[#allocation8 + $0x10] sm:$0xff]
    %v229 = vld [vmem:[#allocation8 + $0x18] sm:$0xff]
    %v230 = vld [vmem:[%s6] sm:$0x1]
    %v232 = vlaneseq
    %v233 = vshrl.u32 %v232, 7
    %v234 = vsub.s32 0, %v233
    %v235 = vrot.slane %v230, %v234
    %vm237 = vcmask 261120
    %v239 = vsel %vm237, %v224, 0
    %v242 = vsel %vm237, %v225, 0
    %244 = vmatprep.subr.mxu0 0.0
    %245 = vmatpush1.msra.mxu0 %v226
    %246 = vmatprep.subr.mxu0 0.0
    %247 = vmatpush1.msra.mxu0 %v227
    %248 = vmatprep.subr.mxu0 0.0
    %249 = vmatpush1.msra.mxu0 %v228
    %250 = vmatprep.subr.mxu0 0.0
    %251 = vmatpush1.msra.mxu0 %v229
    %252 = vmatprep.subr.mxu0 0.0
    %253 = vmatpush1.msra.mxu0 0.0
    %254 = vmatprep.subr.mxu0 0.0
    %255 = vmatpush1.msra.mxu0 0.0
    %256 = vmatprep.subr.mxu0 0.0
    %257 = vmatpush1.msra.mxu0 0.0
    %258 = vmatprep.subr.mxu0 0.0
    %259 = vmatpush1.msra.mxu0 0.0
    %260 = vmatprep.subr.mxu0 0.0
    %261 = vmatpush1.msra.mxu0 0.0
    %262 = vmatprep.subr.mxu0 0.0
    %263 = vmatpush1.msra.mxu0 0.0
    %264 = vmatprep.subr.mxu0 0.0
    %265 = vmatpush1.msra.mxu0 0.0
    %266 = vmatprep.subr.mxu0 0.0
    %267 = vmatpush1.msra.mxu0 0.0
    %268 = vmatprep.subr.mxu0 0.0
    %269 = vmatpush1.msra.mxu0 0.0
    %270 = vmatprep.subr.mxu0 0.0
    %271 = vmatpush1.msra.mxu0 0.0
    %272 = vmatprep.subr.mxu0 0.0
    %273 = vmatpush1.msra.mxu0 0.0
    %274 = vmatprep.subr.mxu0 0.0
    %275 = vmatpush1.msra.mxu0 0.0
    %276 = vmatprep.subr.mxu0 0.0
    %277 = vmatpush1.msra.mxu0 0.0
    %278 = vmatprep.subr.mxu0 0.0
    %279 = vmatpush1.msra.mxu0 0.0
    %280 = vmatprep.subr.mxu0 0.0
    %281 = vmatpush1.msra.mxu0 0.0
    %282 = vmatprep.subr.mxu0 0.0
    %283 = vmatpush1.msra.mxu0 0.0
    %284 = vmatprep.subr.mxu0 0.0
    %285 = vmatpush1.msra.mxu0 0.0
    %286 = vmatprep.subr.mxu0 0.0
    %287 = vmatpush1.msra.mxu0 0.0
    %288 = vmatprep.subr.mxu0 0.0
    %289 = vmatpush1.msra.mxu0 0.0
    %290 = vmatprep.subr.mxu0 0.0
    %291 = vmatpush1.msra.mxu0 0.0
    %292 = vmatprep.subr.mxu0 0.0
    %293 = vmatpush1.msra.mxu0 0.0
    %294 = vmatprep.subr.mxu0 0.0
    %295 = vmatpush1.msra.mxu0 0.0
    %296 = vmatprep.subr.mxu0 0.0
    %297 = vmatpush1.msra.mxu0 0.0
    %298 = vmatprep.subr.mxu0 0.0
    %299 = vmatpush1.msra.mxu0 0.0
    %300 = vmatprep.subr.mxu0 0.0
    %301 = vmatpush1.msra.mxu0 0.0
    %302 = vmatprep.subr.mxu0 0.0
    %303 = vmatpush1.msra.mxu0 0.0
    %304 = vmatprep.subr.mxu0 0.0
    %305 = vmatpush1.msra.mxu0 0.0
    %306 = vmatprep.subr.mxu0 0.0
    %307 = vmatpush1.msra.mxu0 0.0
    %308 = vmatprep.mubr.f32.mxu0 0.0
    %309 = vmatmul.mubr.f32.gmra.mrb[0].mxu0 %v239
    %v310 = vpop.f32.mrb[0].mxu0
    %v311 = vadd.f32 %v235, %v310
    %v312 = vpop.f32.mrb[0].mxu0
    %313 = vmatprep.mubr.f32.mxu0 0.0
    %314 = vmatmul.mubr.f32.gmra.mrb[0].mxu0 %v242
    %v315 = vpop.f32.mrb[0].mxu0
    %v316 = vadd.f32 %v235, %v315
    %v317 = vpop.f32.mrb[0].mxu0
    %318 = vdwg.mxu0
    %vm319 = vcmask 523264
    %320 = vst.msk [vmem:[#allocation9] sm:$0xff] %vm319, %v311
    %321 = vst.msk [vmem:[#allocation9 + $0x8] sm:$0xff] %vm319, %v316
    // Predicated region
    $region46: #{tpu_custom_call.1} parent=1 // pred_check
      _
    $region47: #{tpu_custom_call.1} parent=1 // pred_check_branch
      %323 = sbr.rel (0) target = $region49
    $region48: #{tpu_custom_call.1} parent=1 // pred_region
      %s325 = ssub.s32 256, 256
      %326 = vsyncadd [#allocation5], %s325
      %s327 = sshll.u32 [#allocation9], 4
      %s328 = int_to_ptr.vmem [resolvable:$true] %s327
      %333 = dma.vmem_to_hbm [thread:$0]  %s328, 256, %s7, [#allocation5], 128, 128, 8
    $region49: #{tpu_custom_call.1} parent=1 // pred_fallthru
      _
    // Predicated region
    $region50: #{tpu_custom_call.1} parent=1 // pred_check
      _
    $region51: #{tpu_custom_call.1} parent=1 // pred_check_branch
      %335 = sbr.rel (0) target = $region53
    $region52: #{tpu_custom_call.1} parent=1 // pred_region
      %336 = dma.done [#allocation5], 256
    $region53: #{tpu_custom_call.1} parent=1 // pred_fallthru
      _
    %337 = vsyncpa [#allocation4], 1
    %338 = vsyncpa [#allocation7], 1
    %339 = vsyncpa [#allocation5], 1

</llo_original>
